<compile_context>
chip_gen: v7x
topology: tpu7x:2x2x1
jax: 0.10.0
libtpu: 0.0.40
codegen_flags: <defaults>
</compile_context>

<pallas_src>
import jax
import jax.numpy as jnp
from jax import lax
from jax.experimental import pallas as pl
from jax.experimental.pallas import tpu as pltpu


# --------------------------------------------------------------------------- #
# Kernel: one (Cout, Q) x (Q, St) MXU matmul + bias per grid step.
# --------------------------------------------------------------------------- #
def _conv_gemm_kernel(w_ref, b_ref, xcol_ref, o_ref):
    # w_ref   : (Cout, Q)   reshaped conv weights (Q = Cin*K*K or Cin*K)
    # b_ref   : (Cout, 1)   bias
    # xcol_ref: (Q, St)     im2col'd input tile (one sample, one spatial tile)
    # o_ref   : (Cout, St)
    w = w_ref[...].astype(jnp.float32)
    xc = xcol_ref[...].astype(jnp.float32)
    acc = jnp.dot(w, xc, preferred_element_type=jnp.float32)  # MXU
    o_ref[...] = (acc + b_ref[...].astype(jnp.float32)).astype(o_ref.dtype)


def _pick_spatial_tile(sp):
    """Largest 'nice' multiple-of-128 tile that divides the padded spatial axis."""
    for cand in (2048, 1536, 1024, 768, 512, 384, 256, 128):
        if sp % cand == 0:
            return cand
    return sp  # unreachable: sp is always a multiple of 128


def _conv_gemm(xcol, w2, b2, out_dtype):
    n, q, sp = xcol.shape
    cout = w2.shape[0]
    st = _pick_spatial_tile(sp)
    grid = (n, sp // st)

    flops = 2 * n * cout * q * sp
    bytes_accessed = 4 * (n * q * sp + n * cout * sp + cout * q + cout)

    return pl.pallas_call(
        _conv_gemm_kernel,
        out_shape=jax.ShapeDtypeStruct((n, cout, sp), out_dtype),
        grid_spec=pltpu.PrefetchScalarGridSpec(
            num_scalar_prefetch=0,
            grid=grid,
            in_specs=[
                pl.BlockSpec((cout, q), lambda i, s: (0, 0)),   # weights (resident)
                pl.BlockSpec((cout, 1), lambda i, s: (0, 0)),   # bias (resident)
                pl.BlockSpec((pl.Squeezed(), q, st), lambda i, s: (i, 0, s)),
            ],
            out_specs=pl.BlockSpec((pl.Squeezed(), cout, st), lambda i, s: (i, 0, s)),
        ),
        compiler_params=pltpu.CompilerParams(
            dimension_semantics=("parallel", "parallel"),
        ),
        cost_estimate=pl.CostEstimate(
            flops=flops, transcendentals=0, bytes_accessed=bytes_accessed
        ),
    )(w2, b2, xcol)


# --------------------------------------------------------------------------- #
# Wrapper: Conv.forward
# --------------------------------------------------------------------------- #
def conv(x, weight, bias, method="2D"):
    """Pallas implementation of deepdow Conv.forward (stride 1, 'same' zero pad)."""
    if method == "2D":
        n, cin, lookback, n_assets = x.shape
        cout, cin_w, kh_, kw_ = weight.shape
        assert cin == cin_w and kh_ == kw_
        k = kh_
        p = (k - 1) // 2
        x_pad = jnp.pad(x, ((0, 0), (0, 0), (p, p), (p, p)))
        taps = [
            lax.slice(x_pad, (0, 0, dh, dw), (n, cin, dh + lookback, dw + n_assets))
            for dh in range(k) for dw in range(k)
        ]
        xcol = jnp.stack(taps, axis=2)                       # (n, cin, k*k, L, A)
        xcol = xcol.reshape(n, cin * k * k, lookback * n_assets)
        w2 = weight.reshape(cout, cin * k * k)               # q = ci*k*k + kh*k + kw
        spatial = lookback * n_assets
        out_shape = (n, cout, lookback, n_assets)
    elif method == "1D":
        n, cin, lookback = x.shape
        cout, cin_w, k = weight.shape
        assert cin == cin_w
        p = (k - 1) // 2
        x_pad = jnp.pad(x, ((0, 0), (0, 0), (p, p)))
        taps = [lax.slice(x_pad, (0, 0, d), (n, cin, d + lookback)) for d in range(k)]
        xcol = jnp.stack(taps, axis=2)                       # (n, cin, k, L)
        xcol = xcol.reshape(n, cin * k, lookback)
        w2 = weight.reshape(cout, cin * k)                   # q = ci*k + d
        spatial = lookback
        out_shape = (n, cout, lookback)
    else:
        raise ValueError("Invalid method {}, only supports '1D' or '2D'.".format(method))

    # Lane-dense spatial axis: pad to a multiple of 128.  The zero columns only
    # ever produce bias values and are sliced off below.
    sp = ((spatial + 127) // 128) * 128
    if sp != spatial:
        xcol = jnp.pad(xcol, ((0, 0), (0, 0), (0, sp - spatial)))

    out2d = _conv_gemm(xcol, w2, bias.reshape(cout, 1), x.dtype)
    out2d = out2d[:, :, :spatial]
    return out2d.reshape(out_shape)


# --------------------------------------------------------------------------- #
# Pure-JAX reference (same math) for a sanity check.
# --------------------------------------------------------------------------- #
def _conv_reference(x, weight, bias, method="2D"):
    p = (weight.shape[-1] - 1) // 2
    if method == "2D":
        out = lax.conv_general_dilated(
            x, weight, window_strides=(1, 1), padding=((p, p), (p, p)),
            dimension_numbers=("NCHW", "OIHW", "NCHW"),
            precision=lax.Precision.HIGHEST)
        return out + bias[None, :, None, None]
    else:
        out = lax.conv_general_dilated(
            x, weight, window_strides=(1,), padding=((p, p),),
            dimension_numbers=("NCH", "OIH", "NCH"),
            precision=lax.Precision.HIGHEST)
        return out + bias[None, :, None]


if __name__ == "__main__":
    key = jax.random.PRNGKey(0)
    k1, k2, k3, k4, k5 = jax.random.split(key, 5)

    # Small shapes consistent with the module: (n_samples, n_channels, lookback, n_assets)
    n_samples, n_in, n_out, lookback, n_assets, ksize = 2, 4, 8, 16, 16, 3

    # ---- 2D path -----------------------------------------------------------
    x2 = jax.random.normal(k1, (n_samples, n_in, lookback, n_assets), dtype=jnp.float32)
    w2 = 0.1 * jax.random.normal(k2, (n_out, n_in, ksize, ksize), dtype=jnp.float32)
    b = 0.1 * jax.random.normal(k3, (n_out,), dtype=jnp.float32)

    out2 = jax.block_until_ready(conv(x2, w2, b, method="2D"))
    ref2 = _conv_reference(x2, w2, b, method="2D")
    assert out2.shape == (n_samples, n_out, lookback, n_assets)
    assert jnp.allclose(out2, ref2, atol=1e-3, rtol=1e-3), float(jnp.max(jnp.abs(out2 - ref2)))

    # ---- 1D path -----------------------------------------------------------
    x1 = jax.random.normal(k4, (n_samples, n_in, lookback), dtype=jnp.float32)
    w1 = 0.1 * jax.random.normal(k5, (n_out, n_in, ksize), dtype=jnp.float32)

    out1 = jax.block_until_ready(conv(x1, w1, b, method="1D"))
    ref1 = _conv_reference(x1, w1, b, method="1D")
    assert out1.shape == (n_samples, n_out, lookback)
    assert jnp.allclose(out1, ref1, atol=1e-3, rtol=1e-3), float(jnp.max(jnp.abs(out1 - ref1)))

    print("KERNEL_OK")
</pallas_src>

<mosaic_0001>
module attributes {stable_mosaic.version = 11 : i64} {
  func.func @_conv_gemm_kernel(%arg0: i32, %arg1: i32, %arg2: memref<8x36xf32, #tpu.memory_space<vmem>>, %arg3: memref<8x1xf32, #tpu.memory_space<vmem>>, %arg4: memref<1x36x256xf32, #tpu.memory_space<vmem>>, %arg5: memref<1x8x256xf32, #tpu.memory_space<vmem>>) attributes {dimension_semantics = [#tpu.dimension_semantics<parallel>, #tpu.dimension_semantics<parallel>], iteration_bounds = array<i64: 2, 1>, scalar_prefetch = 0 : i64, scratch_operands = 0 : i64, tpu.core_type = #tpu.core_type<tc>, window_params = [{pipeline_mode = #tpu.pipeline_mode<synchronous>, transform_indices = @transform_0, window_bounds = array<i64: 8, 36>}, {pipeline_mode = #tpu.pipeline_mode<synchronous>, transform_indices = @transform_1, window_bounds = array<i64: 8, 1>}, {transform_indices = @transform_2, window_bounds = array<i64: 1, 36, 256>}, {transform_indices = @transform_3, window_bounds = array<i64: 1, 8, 256>}]} {
    %c0 = arith.constant 0 : index
    %c0_0 = arith.constant 0 : index
    %0 = vector.load %arg2[%c0, %c0_0] : memref<8x36xf32, #tpu.memory_space<vmem>>, vector<8x36xf32>
    %c0_1 = arith.constant 0 : index
    %c0_2 = arith.constant 0 : index
    %c0_3 = arith.constant 0 : index
    %1 = vector.load %arg4[%c0_1, %c0_2, %c0_3] : memref<1x36x256xf32, #tpu.memory_space<vmem>>, vector<1x36x256xf32>
    %2 = vector.shape_cast %1 : vector<1x36x256xf32> to vector<36x256xf32>
    %cst = arith.constant dense<0.000000e+00> : vector<8x256xf32>
    %3 = tpu.matmul %0, %2, %cst {dimension_numbers = #tpu.dot_dimension_numbers<[1], [0], [0], [1], [0, 0, 1, 1], [], []>} : vector<8x36xf32>, vector<36x256xf32>, vector<8x256xf32> -> vector<8x256xf32>
    %c0_4 = arith.constant 0 : index
    %c0_5 = arith.constant 0 : index
    %4 = vector.load %arg3[%c0_4, %c0_5] : memref<8x1xf32, #tpu.memory_space<vmem>>, vector<8x1xf32>
    %5 = vector.broadcast %4 : vector<8x1xf32> to vector<8x256xf32>
    %6 = arith.addf %3, %5 : vector<8x256xf32>
    %c0_6 = arith.constant 0 : index
    %c0_7 = arith.constant 0 : index
    %c0_8 = arith.constant 0 : index
    %7 = vector.load %arg5[%c0_6, %c0_7, %c0_8] : memref<1x8x256xf32, #tpu.memory_space<vmem>>, vector<1x8x256xf32>
    %8 = vector.shape_cast %7 : vector<1x8x256xf32> to vector<8x256xf32>
    %9 = vector.shape_cast %6 : vector<8x256xf32> to vector<1x8x256xf32>
    tpu.vector_store %arg5[%c0_6, %c0_7, %c0_8], %9 {strides = array<i32>} : memref<1x8x256xf32, #tpu.memory_space<vmem>>, vector<1x8x256xf32>,
    return
  }
  func.func @transform_0(%arg0: i32, %arg1: i32) -> (i32, i32) {
    %c0_i32 = arith.constant 0 : i32
    %c0_i32_0 = arith.constant 0 : i32
    %c0_i32_1 = arith.constant 0 : i32
    return %c0_i32, %c0_i32_0 : i32, i32
  }
  func.func @transform_1(%arg0: i32, %arg1: i32) -> (i32, i32) {
    %c0_i32 = arith.constant 0 : i32
    %c0_i32_0 = arith.constant 0 : i32
    %c0_i32_1 = arith.constant 0 : i32
    return %c0_i32, %c0_i32_0 : i32, i32
  }
  func.func @transform_2(%arg0: i32, %arg1: i32) -> (i32, i32, i32) {
    %c0_i32 = arith.constant 0 : i32
    %c0_i32_0 = arith.constant 0 : i32
    return %arg0, %c0_i32, %arg1 : i32, i32, i32
  }
  func.func @transform_3(%arg0: i32, %arg1: i32) -> (i32, i32, i32) {
    %c0_i32 = arith.constant 0 : i32
    %c0_i32_0 = arith.constant 0 : i32
    return %arg0, %c0_i32, %arg1 : i32, i32, i32
  }
}

</mosaic_0001>

<llo_original>
// kernel: tpu_custom_call.1
$region0: #{tpu_custom_call.1}
  #allocation0 [shape = 'u32[]', space=smem, size = 0x4, offset = 0x4, fixed_abs, tag = 'smem constant byte address 0x4 - core index']
  #allocation1 [shape = 'u32[144,128]{1,0:T(1,128)}', space=vmem, size = 0x12000, scoped, tag = 'internal scratch']
  %s0 = inlined_call_operand.vmem [shape: f32[8,36], index: 0, kind: input, shape index: {}]
  %s1 = inlined_call_operand.vmem [shape: f32[8,1], index: 1, kind: input, shape index: {}]
  %s2 = inlined_call_operand.vmem [shape: f32[2,36,256], index: 2, kind: input, shape index: {}]
  %s3 = inlined_call_operand.hbm [shape: f32[2,8,256], index: 3, kind: output, shape index: {}]
  %s4 = sld [smem:[#allocation0]]
  $region45: #{tpu_custom_call.1} parent=0
    _
  %s6 = ssub.s32 1, %s4
  %s7 = scalar_select 0, %s6, %s4
  $region1: #{tpu_custom_call.1} parent=0
    #allocation2 [shape = 'u8[16384]{0}', space=vmem, size = 0x4000, scoped, tag = 'output window, operand 0']
    #allocation3 [shape = 's32[2]{0}', space=sflag, size = 0x8, scoped, tag = 'scoped memory for tpu_custom_call.1']
    %8 = vsyncpa [#allocation3], 0
    %s9 = scalar_lea.sflag [#allocation3], 1
    %10 = vsyncpa %s9, 0
    loop: start=0, step=1, limit=4
    $region2: #{tpu_custom_call.1} parent=1 // loop_pre_header
      _
    $region3: #{tpu_custom_call.1} parent=1 // loop_header
      %s12 = sphi 0, %s16
      %p13 = scmp.ge.s32.totalorder %s12, 4
      %s19 = sphi 0, %s31
      %s20 = sphi 0, %s27
      %s21 = sphi 0, %s19
      %s22 = sphi 0, %s20
      %s23 = sphi 0, %s21
      %s24 = sphi 0, %s22
      %s32 = sphi 0, %s32
      %s34 = sphi 0, %s32
      %s35 = sphi 0, %s34
      %s49 = sphi 0, %s35
      %s53 = sphi 0, %s53
      %s55 = sphi 0, %s53
      %s56 = sphi 0, %s55
      %s70 = sphi 0, %s56
      %s78 = sphi 0, %s80
      %s81 = sphi 0, %s78
      %s82 = sphi 0, %s81
      %s98 = sphi 0, %s82
      %s106 = sphi 0, %s108
      %s109 = sphi 0, %s106
      %s110 = sphi 0, %s109
      %s126 = sphi 0, %s110
    $region4: #{tpu_custom_call.1} parent=1 // loop_header_branch
      %15 = sbr.rel (%p13) target = $region8
    $region5: #{tpu_custom_call.1} parent=1 // loop_body
      %s17 = ssub.s32 %s12, 1
      %s18 = ssub.s32 %s12, 2
      %s25 = sadd.s32 1, %s20
      %p26 = scmp.ge.s32.totalorder %s25, 1
      %s27 = scalar_select %p26, 0, %s25
      %s28 = sadd.s32 1, %s19
      %s29 = scalar_select %p26, %s28, %s19
      %p30 = scmp.ge.s32.totalorder %s29, 2
      %s31 = scalar_select %p30, 0, %s29
      %s33 = sadd.s32 %s32, 1
      %p36 = scmp.eq.s32.totalorder %s12, 1
      %p37 = scmp.ne.s32.totalorder %s32, %s34
      %p38 = scmp.eq.s32.totalorder %s12, 0
      %p39 = por %p37, %p38
      %p40 = scmp.ne.s32.totalorder %s32, %s34
      %p41 = scmp.eq.s32.totalorder %s17, 1
      %p42 = por %p40, %p41
      %p43 = scmp.ne.s32.totalorder %s34, %s35
      %p44 = scmp.eq.s32.totalorder %s17, 0
      %p45 = por %p43, %p44
      %p46 = scmp.ne.s32.totalorder %s34, %s35
      %p47 = scmp.eq.s32.totalorder %s18, 1
      %p48 = por %p46, %p47
      %p50 = scmp.ne.s32.totalorder %s35, %s49
      %p51 = scmp.eq.s32.totalorder %s18, 0
      %p52 = por %p50, %p51
      %s54 = sadd.s32 %s53, 1
      %p57 = scmp.eq.s32.totalorder %s12, 1
      %p58 = scmp.ne.s32.totalorder %s53, %s55
      %p59 = scmp.eq.s32.totalorder %s12, 0
      %p60 = por %p58, %p59
      %p61 = scmp.ne.s32.totalorder %s53, %s55
      %p62 = scmp.eq.s32.totalorder %s17, 1
      %p63 = por %p61, %p62
      %p64 = scmp.ne.s32.totalorder %s55, %s56
      %p65 = scmp.eq.s32.totalorder %s17, 0
      %p66 = por %p64, %p65
      %p67 = scmp.ne.s32.totalorder %s55, %s56
      %p68 = scmp.eq.s32.totalorder %s18, 1
      %p69 = por %p67, %p68
      %p71 = scmp.ne.s32.totalorder %s56, %s70
      %p72 = scmp.eq.s32.totalorder %s18, 0
      %p73 = por %p71, %p72
      %s74 = ssub.s32 %s19, %s31
      %s75 = ssub.s32 %s20, %s27
      %s76 = sor.u32 %s74, %s75
      %p77 = scmp.eq.s32.totalorder %s76, 0
      %s79 = sadd.s32 %s78, 1
      %s80 = scalar_select %p77, %s78, %s79
      %p83 = pneg %p77
      %p84 = scmp.eq.s32.totalorder %s12, 1
      %p85 = por %p83, %p84
      %p86 = scmp.ne.s32.totalorder %s78, %s81
      %p87 = scmp.eq.s32.totalorder %s12, 0
      %p88 = por %p86, %p87
      %p89 = scmp.ne.s32.totalorder %s78, %s81
      %p90 = scmp.eq.s32.totalorder %s17, 1
      %p91 = por %p89, %p90
      %p92 = scmp.ne.s32.totalorder %s81, %s82
      %p93 = scmp.eq.s32.totalorder %s17, 0
      %p94 = por %p92, %p93
      %p95 = scmp.ne.s32.totalorder %s81, %s82
      %p96 = scmp.eq.s32.totalorder %s18, 1
      %p97 = por %p95, %p96
      %p99 = scmp.ne.s32.totalorder %s82, %s98
      %p100 = scmp.eq.s32.totalorder %s18, 0
      %p101 = por %p99, %p100
      %s102 = ssub.s32 %s19, %s31
      %s103 = ssub.s32 %s20, %s27
      %s104 = sor.u32 %s102, %s103
      %p105 = scmp.eq.s32.totalorder %s104, 0
      %s107 = sadd.s32 %s106, 1
      %s108 = scalar_select %p105, %s106, %s107
      %p111 = pneg %p105
      %p112 = scmp.eq.s32.totalorder %s12, 1
      %p113 = por %p111, %p112
      %p114 = scmp.ne.s32.totalorder %s106, %s109
      %p115 = scmp.eq.s32.totalorder %s12, 0
      %p116 = por %p114, %p115
      %p117 = scmp.ne.s32.totalorder %s106, %s109
      %p118 = scmp.eq.s32.totalorder %s17, 1
      %p119 = por %p117, %p118
      %p120 = scmp.ne.s32.totalorder %s109, %s110
      %p121 = scmp.eq.s32.totalorder %s17, 0
      %p122 = por %p120, %p121
      %p123 = scmp.ne.s32.totalorder %s109, %s110
      %p124 = scmp.eq.s32.totalorder %s18, 1
      %p125 = por %p123, %p124
      %p127 = scmp.ne.s32.totalorder %s110, %s126
      %p128 = scmp.eq.s32.totalorder %s18, 0
      %p129 = por %p127, %p128
      %p130 = scmp.le.s32.totalorder 1, %s12
      %p131 = scmp.lt.s32.totalorder %s12, 3
      %p132 = pnand %p130, %p131
      %p133 = pneg %p132
      // Predicated region
      $region9: #{tpu_custom_call.1} parent=5 // pred_check
        _
      $region10: #{tpu_custom_call.1} parent=5 // pred_check_branch
        %135 = sbr.rel (%p132) target = $region12
      $region11: #{tpu_custom_call.1} parent=5 // pred_region
        %s136 = ssub.s32 %s12, 1
        // Predicated region
        $region13: #{tpu_custom_call.1} parent=11 // pred_check
          %p137 = pneg %p45
        $region14: #{tpu_custom_call.1} parent=11 // pred_check_branch
          %139 = sbr.rel (%p137) target = $region16
        $region15: #{tpu_custom_call.1} parent=11 // pred_region
          _
        $region16: #{tpu_custom_call.1} parent=11 // pred_fallthru
          _
        // Predicated region
        $region17: #{tpu_custom_call.1} parent=11 // pred_check
          %p140 = pneg %p66
        $region18: #{tpu_custom_call.1} parent=11 // pred_check_branch
          %142 = sbr.rel (%p140) target = $region20
        $region19: #{tpu_custom_call.1} parent=11 // pred_region
          _
        $region20: #{tpu_custom_call.1} parent=11 // pred_fallthru
          _
      $region12: #{tpu_custom_call.1} parent=5 // pred_fallthru
        _
      %p143 = scmp.lt.s32.totalorder %s12, 2
      // Predicated region
      $region21: #{tpu_custom_call.1} parent=5 // pred_check
        %p144 = pneg %p143
      $region22: #{tpu_custom_call.1} parent=5 // pred_check_branch
        %146 = sbr.rel (%p144) target = $region24
      $region23: #{tpu_custom_call.1} parent=5 // pred_region
        // Predicated region
        $region25: #{tpu_custom_call.1} parent=23 // pred_check
          %p147 = pneg %p88
        $region26: #{tpu_custom_call.1} parent=23 // pred_check_branch
          %149 = sbr.rel (%p147) target = $region28
        $region27: #{tpu_custom_call.1} parent=23 // pred_region
          %s150 = smul.u32 2, %s20
          %p151 = scmp.lt.s32.totalorder %s19, 1
          %s152 = scalar_select %p151, %s19, 1
          %p153 = scmp.lt.s32.totalorder %s150, 1
          %s154 = scalar_select %p153, %s150, 1
          %s155 = smul.addr %s152, 10
          %s156 = sadd.s32 %s154, %s155
          %s157 = smul.addr %s156, 8
          %s158 = scalar_lea.vmem %s2, %s157
          %s159 = smul.u32 2, %s20
        $region28: #{tpu_custom_call.1} parent=23 // pred_fallthru
          _
      $region24: #{tpu_custom_call.1} parent=5 // pred_fallthru
        _
      %p160 = scmp.le.s32.totalorder 1, %s12
      %p161 = scmp.lt.s32.totalorder %s12, 3
      %p162 = pnand %p160, %p161
      %p163 = pneg %p162
      // Predicated region
      $region29: #{tpu_custom_call.1} parent=5 // pred_check
        _
      $region30: #{tpu_custom_call.1} parent=5 // pred_check_branch
        %165 = sbr.rel (%p162) target = $region32
      $region31: #{tpu_custom_call.1} parent=5 // pred_region
        %s166 = ssub.s32 %s12, 1
        %p167 = pneg %p45
        %p168 = pneg %p42
        %p169 = pneg %p66
        %p170 = pneg %p63
        %s171 = smul.u32 2, %s22
        %p172 = scmp.lt.s32.totalorder %s21, 1
        %s173 = scalar_select %p172, %s21, 1
        %p174 = scmp.lt.s32.totalorder %s171, 1
        %s175 = scalar_select %p174, %s171, 1
        %s176 = smul.addr %s173, 10
        %s177 = sadd.s32 %s175, %s176
        %s178 = smul.addr %s177, 8
        %s179 = scalar_lea.vmem %s2, %s178
        %p180 = pneg %p94
        %p181 = pneg %p91
        %p182 = pneg %p122
        %p183 = pneg %p119
        %s184 = sand.u32 %s109, 1
        %s185 = scalar_lea.sflag [#allocation3], %s184
        %s186 = sand.u32 %s109, 1
        %s187 = smul.addr %s186, 16
        %s188 = scalar_lea.vmem [#allocation2], %s187
        %s189 = smul.u32 2, %s22
        %p190 = scmp.lt.s32.totalorder %s21, 1
        %s191 = scalar_select %p190, %s21, 1
        %p192 = scmp.lt.s32.totalorder %s189, 1
        %s193 = scalar_select %p192, %s189, 1
        %s194 = smul.addr %s191, 10
        %s195 = sadd.s32 %s193, %s194
        %s196 = smul.addr %s195, 8
        %s197 = scalar_lea.vmem %s2, %s196
        %s198 = smul.u32 2, %s22
        %s199 = smul.u32 2, %s22
        %v200 = vld [vmem:[%s0] sm:$0xff]
        %v201 = vld [vmem:[%s197] sm:$0xff]
        %v202 = vld [vmem:[%s197 + $0x8] sm:$0xff]
        %v203 = vld [vmem:[%s197 + $0x10] sm:$0xff]
        %v204 = vld [vmem:[%s197 + $0x18] sm:$0xff]
        %v205 = vld [vmem:[%s197 + $0x20] sm:$0xff]
        %v206 = vld [vmem:[%s197 + $0x28] sm:$0xff]
        %v207 = vld [vmem:[%s197 + $0x30] sm:$0xff]
        %v208 = vld [vmem:[%s197 + $0x38] sm:$0xff]
        %v209 = vld [vmem:[%s197 + $0x40] sm:$0xf]
        %v210 = vld [vmem:[%s197 + $0x48] sm:$0xf]
        %v211 = vld [vmem:[%s1] sm:$0xff]
        %213 = vset.pattern.permute.xlu0 0
        %214 = vperm.xlu0 %213, %v211
        %v215 = vpop.permute.xlu0 %214
        %vm217 = vcmask 293888
        %v219 = vsel %vm217, %v200, 0
        %vm221 = vcmask 1043456
        %v223 = vsel %vm221, %v209, 0
        %v226 = vsel %vm221, %v210, 0
        %228 = vmatprep.subr.mxu0 %v202
        %229 = vmatpush1.msra.mxu0 %v201
        %230 = vmatprep.subr.mxu0 %v204
        %231 = vmatpush1.msra.mxu0 %v203
        %232 = vmatprep.subr.mxu0 %v206
        %233 = vmatpush1.msra.mxu0 %v205
        %234 = vmatprep.subr.mxu0 %v208
        %235 = vmatpush1.msra.mxu0 %v207
        %236 = vmatprep.subr.mxu0 %v226
        %237 = vmatpush1.msra.mxu0 %v223
        %238 = vmatprep.subr.mxu0 0.0
        %239 = vmatpush1.msra.mxu0 0.0
        %240 = vmatprep.subr.mxu0 0.0
        %241 = vmatpush1.msra.mxu0 0.0
        %242 = vmatprep.subr.mxu0 0.0
        %243 = vmatpush1.msra.mxu0 0.0
        %244 = vmatprep.subr.mxu0 0.0
        %245 = vmatpush1.msra.mxu0 0.0
        %246 = vmatprep.subr.mxu0 0.0
        %247 = vmatpush1.msra.mxu0 0.0
        %248 = vmatprep.subr.mxu0 0.0
        %249 = vmatpush1.msra.mxu0 0.0
        %250 = vmatprep.subr.mxu0 0.0
        %251 = vmatpush1.msra.mxu0 0.0
        %252 = vmatprep.subr.mxu0 0.0
        %253 = vmatpush1.msra.mxu0 0.0
        %254 = vmatprep.subr.mxu0 0.0
        %255 = vmatpush1.msra.mxu0 0.0
        %256 = vmatprep.subr.mxu0 0.0
        %257 = vmatpush1.msra.mxu0 0.0
        %258 = vmatprep.subr.mxu0 0.0
        %259 = vmatpush1.msra.mxu0 0.0
        %260 = vmatprep.subr.mxu0 0.0
        %261 = vmatpush1.msra.mxu0 0.0
        %262 = vmatprep.subr.mxu0 0.0
        %263 = vmatpush1.msra.mxu0 0.0
        %264 = vmatprep.subr.mxu0 0.0
        %265 = vmatpush1.msra.mxu0 0.0
        %266 = vmatprep.subr.mxu0 0.0
        %267 = vmatpush1.msra.mxu0 0.0
        %268 = vmatprep.subr.mxu0 0.0
        %269 = vmatpush1.msra.mxu0 0.0
        %270 = vmatprep.subr.mxu0 0.0
        %271 = vmatpush1.msra.mxu0 0.0
        %272 = vmatprep.subr.mxu0 0.0
        %273 = vmatpush1.msra.mxu0 0.0
        %274 = vmatprep.subr.mxu0 0.0
        %275 = vmatpush1.msra.mxu0 0.0
        %276 = vmatprep.subr.mxu0 0.0
        %277 = vmatpush1.msra.mxu0 0.0
        %278 = vmatprep.subr.mxu0 0.0
        %279 = vmatpush1.msra.mxu0 0.0
        %280 = vmatprep.subr.mxu0 0.0
        %281 = vmatpush1.msra.mxu0 0.0
        %282 = vmatprep.subr.mxu0 0.0
        %283 = vmatpush1.msra.mxu0 0.0
        %284 = vmatprep.subr.mxu0 0.0
        %285 = vmatpush1.msra.mxu0 0.0
        %286 = vmatprep.subr.mxu0 0.0
        %287 = vmatpush1.msra.mxu0 0.0
        %288 = vmatprep.subr.mxu0 0.0
        %289 = vmatpush1.msra.mxu0 0.0
        %290 = vmatprep.subr.mxu0 0.0
        %291 = vmatpush1.msra.mxu0 0.0
        %292 = vmatprep.mubr.f32.mxu0 0.0
        %293 = vmatmul.mubr.f32.gmra.mrb[0].mxu0 %v219
        %v294 = vpop.f32.mrb[0].mxu0
        %v295 = vadd.f32 %v215, %v294
        %v296 = vpop.f32.mrb[0].mxu0
        %v297 = vadd.f32 %v215, %v296
        %298 = vdwg.mxu0
        %299 = vst [vmem:[%s188] sm:$0xff] %v295
        %300 = vst [vmem:[%s188 + $0x8] sm:$0xff] %v297
        %s301 = sand.u32 %s109, 1
        %s302 = scalar_lea.sflag [#allocation3], %s301
        %s303 = sand.u32 %s109, 1
        %s304 = smul.addr %s303, 16
        %s305 = scalar_lea.vmem [#allocation2], %s304
        // Predicated region
        $region33: #{tpu_custom_call.1} parent=31 // pred_check
          %p306 = pneg %p119
        $region34: #{tpu_custom_call.1} parent=31 // pred_check_branch
          %308 = sbr.rel (%p306) target = $region36
        $region35: #{tpu_custom_call.1} parent=31 // pred_region
          %s309 = smul.u32 2, %s22
          %s311 = ssub.s32 256, 256
          %312 = vsyncadd %s302, %s311
          %s313 = smul.addr %s21, 2
          %s314 = sadd.s32 %s309, %s313
          %s315 = smul.addr %s314, 128
          %s316 = scalar_lea.hbm %s3, %s315
          %s318 = sshll.u32 %s305, 4
          %s319 = int_to_ptr.vmem [resolvable:$true] %s318
          %321 = dma.vmem_to_hbm [thread:$0]  %s319, 256, %s316, %s302
        $region36: #{tpu_custom_call.1} parent=31 // pred_fallthru
          _
      $region32: #{tpu_custom_call.1} parent=5 // pred_fallthru
        _
      %p322 = scmp.le.s32.totalorder 2, %s12
      // Predicated region
      $region37: #{tpu_custom_call.1} parent=5 // pred_check
        %p323 = pneg %p322
      $region38: #{tpu_custom_call.1} parent=5 // pred_check_branch
        %325 = sbr.rel (%p323) target = $region40
      $region39: #{tpu_custom_call.1} parent=5 // pred_region
        %s326 = ssub.s32 %s12, 2
        // Predicated region
        $region41: #{tpu_custom_call.1} parent=39 // pred_check
          %p327 = pneg %p125
        $region42: #{tpu_custom_call.1} parent=39 // pred_check_branch
          %329 = sbr.rel (%p327) target = $region44
        $region43: #{tpu_custom_call.1} parent=39 // pred_region
          %s330 = sand.u32 %s110, 1
          %s331 = scalar_lea.sflag [#allocation3], %s330
          %s332 = sand.u32 %s110, 1
          %s333 = smul.addr %s332, 16
          %s334 = scalar_lea.vmem [#allocation2], %s333
          %335 = dma.done %s331, 256
        $region44: #{tpu_custom_call.1} parent=39 // pred_fallthru
          _
      $region40: #{tpu_custom_call.1} parent=5 // pred_fallthru
        _
    $region6: #{tpu_custom_call.1} parent=1 // loop_footer
      %s16 = sadd.s32 1, %s12
    $region7: #{tpu_custom_call.1} parent=1 // loop_footer_branch
      %11 = sbr.rel target = $region3
    $region8: #{tpu_custom_call.1} parent=1 // loop_exit
      _
    %336 = vsyncpa [#allocation3], 1
    %s337 = scalar_lea.sflag [#allocation3], 1
    %338 = vsyncpa %s337, 1

</llo_original>
